<compile_context>
chip_gen: v6e
topology: v6e:2x2x1
jax: 0.10.0
libtpu: 0.0.40
codegen_flags: <defaults>
</compile_context>

<pallas_src>
import functools

import jax
import jax.numpy as jnp
from jax.experimental import pallas as pl
from jax.experimental.pallas import tpu as pltpu


def _cdiv(a, b):
    return -(-a // b)


def _round_up(a, b):
    return _cdiv(a, b) * b


def _patch_embed_kernel(zc_ref, w_ref, affine_ref, o_ref, *, eps):
    """One (P_tile, E) token tile: patchify matmul + conv bias + LayerNorm.

    zc_ref:     (Pt, Kc)  im2col'd activations (lane-dense contraction axis)
    w_ref:      (Kc, E)   regrouped conv weights
    affine_ref: (3, E)    row0 = conv bias, row1 = LN gamma, row2 = LN beta (f32)
    o_ref:      (Pt, E)   tokens, embed_dim on lanes (lane-dense stores)
    """
    # Single full-depth MXU matmul, f32 accumulation.
    y = jnp.dot(zc_ref[...], w_ref[...], preferred_element_type=jnp.float32)
    y = y + affine_ref[0:1, :]                        # conv bias
    mean = jnp.mean(y, axis=-1, keepdims=True)        # LayerNorm over embed_dim
    yc = y - mean
    var = jnp.mean(yc * yc, axis=-1, keepdims=True)
    yn = yc * jax.lax.rsqrt(var + eps)
    o_ref[...] = (yn * affine_ref[1:2, :] + affine_ref[2:3, :]).astype(o_ref.dtype)


@functools.partial(jax.jit,
                   static_argnames=("patch_size", "stride", "eps", "p_tile"))
def _patch_embed_tokens(x_nchw, w_oihw, bias, gamma, beta, *, patch_size, stride,
                        eps=1e-5, p_tile=256):
    B, Cin, H, W = x_nchw.shape
    E = w_oihw.shape[0]
    K, s = patch_size, stride
    p = K // 2
    OH = (H + 2 * p - K) // s + 1
    OW = (W + 2 * p - K) // s + 1
    Qh = _cdiv(K, s)
    Qw = _cdiv(K, s)
    Hs = max(OH + Qh - 1, _cdiv(H + p, s))
    Ws = max(OW + Qw - 1, _cdiv(W + p, s))
    Hp, Wp = Hs * s, Ws * s
    Cs = s * s * Cin
    Kc = Qh * Qw * Cs                      # contraction depth of the single matmul
    P = OH * OW

    # Token-tile grid: LayerNorm is per-token, so P tiles are dependency-free.
    Pt = min(p_tile, _round_up(P, 8))
    Pp = _round_up(P, Pt)

    # bf16 callers get the native bf16 MXU path (weights cast to match).
    compute_dtype = x_nchw.dtype

    # ---- wrapper-side layout plumbing (pure XLA, no kernel compute) ----
    x = jnp.transpose(x_nchw, (0, 2, 3, 1))                       # NCHW -> NHWC
    xp = jnp.pad(x, ((0, 0), (p, Hp - H - p), (p, Wp - W - p), (0, 0)))
    # stride-phase space-to-depth:
    #   z[b, i, j, (rh*s + rw)*Cin + c] = xp[b, i*s + rh, j*s + rw, c]
    z = xp.reshape(B, Hs, s, Ws, s, Cin)
    z = jnp.transpose(z, (0, 1, 3, 2, 4, 5)).reshape(B, Hs, Ws, Cs)
    # halo-free im2col: concatenate the Qh*Qw stride-1 taps along the channel
    # axis so the kernel sees one lane-dense (P, Kc) operand.
    taps = [z[:, qh:qh + OH, qw:qw + OW, :]
            for qh in range(Qh) for qw in range(Qw)]
    zc = jnp.concatenate(taps, axis=-1).reshape(B, P, Kc)
    zc = jnp.pad(zc, ((0, 0), (0, Pp - P), (0, 0))).astype(compute_dtype)

    # conv weights: OIHW -> HWIO, zero-pad kernel to (Qh*s, Qw*s), regroup to
    # (Kc, E) in the same (qh, qw, rh, rw, c) order used for zc above.
    w_hwio = jnp.transpose(w_oihw, (2, 3, 1, 0))                  # (K,K,Cin,E)
    w_pad = jnp.pad(w_hwio, ((0, Qh * s - K), (0, Qw * s - K), (0, 0), (0, 0)))
    w_r = w_pad.reshape(Qh, s, Qw, s, Cin, E)
    w_r = jnp.transpose(w_r, (0, 2, 1, 3, 4, 5)).reshape(Kc, E)
    w_r = w_r.astype(compute_dtype)

    affine = jnp.stack([bias, gamma, beta]).astype(jnp.float32)   # packed (3, E)

    # Size-derived VMEM budget: double-buffered blocks + f32 matmul/LN temps,
    # clamped to 48 MiB so v7x (64 MiB physical) keeps headroom.
    in_b = jnp.dtype(compute_dtype).itemsize
    out_b = jnp.dtype(x_nchw.dtype).itemsize
    est = 2 * (Pt * Kc * in_b + Kc * E * in_b + Pt * E * out_b) + 4 * Pt * E * 4
    vmem_limit = int(min(48 * 2**20, max(32 * 2**20, 2 * est)))

    kernel = functools.partial(_patch_embed_kernel, eps=eps)
    out = pl.pallas_call(
        kernel,
        out_shape=jax.ShapeDtypeStruct((B, Pp, E), x_nchw.dtype),
        grid=(B, Pp // Pt),
        in_specs=[
            pl.BlockSpec((None, Pt, Kc), lambda b, t: (b, t, 0)),
            pl.BlockSpec((Kc, E), lambda b, t: (0, 0)),
            pl.BlockSpec((3, E), lambda b, t: (0, 0)),
        ],
        out_specs=pl.BlockSpec((None, Pt, E), lambda b, t: (b, t, 0)),
        compiler_params=pltpu.CompilerParams(
            dimension_semantics=("parallel", "parallel"),
            vmem_limit_bytes=vmem_limit),
    )(zc, w_r, affine)
    return out[:, :P, :]


def patch_embed_forward(x_nchw, params, *, patch_size=7, stride=4):
    """PatchEmbed.forward: returns (tokens (B, num_patches, E), H_out, W_out)."""
    tokens = _patch_embed_tokens(x_nchw, params["proj_w"], params["proj_b"],
                                 params["ln_gamma"], params["ln_beta"],
                                 patch_size=patch_size, stride=stride)
    H, W = x_nchw.shape[2], x_nchw.shape[3]
    p = patch_size // 2
    OH = (H + 2 * p - patch_size) // stride + 1
    OW = (W + 2 * p - patch_size) // stride + 1
    return tokens, OH, OW


def init_params(key, in_chans, embed_dim, patch_size):
    """Synthetic params mirroring PatchEmbed.__init__ shapes.

    Conv weight uses the module's N(0, sqrt(2/fan_out)) init; bias / LN params
    are deterministic nonzero values so the bias + affine paths are exercised.
    """
    (k1,) = jax.random.split(key, 1)
    fan_out = patch_size * patch_size * embed_dim
    w = jax.random.normal(k1, (embed_dim, in_chans, patch_size, patch_size),
                          jnp.float32) * jnp.sqrt(2.0 / fan_out)
    idx = jnp.arange(embed_dim, dtype=jnp.float32)
    return {
        "proj_w": w,                                  # (E, Cin, K, K) OIHW
        "proj_b": 0.01 * idx,                         # (E,)
        "ln_gamma": 1.0 + 0.02 * jnp.cos(idx),        # (E,)
        "ln_beta": 0.01 * jnp.sin(idx),               # (E,)
    }


def _reference(x_nchw, params, *, patch_size=7, stride=4, eps=1e-5):
    """Pure-JAX reference (lax.conv + LayerNorm) for correctness check."""
    p = patch_size // 2
    x = jnp.transpose(x_nchw, (0, 2, 3, 1))
    w_hwio = jnp.transpose(params["proj_w"], (2, 3, 1, 0))
    y = jax.lax.conv_general_dilated(
        x, w_hwio, window_strides=(stride, stride), padding=((p, p), (p, p)),
        dimension_numbers=("NHWC", "HWIO", "NHWC"),
        precision=jax.lax.Precision.HIGHEST)
    y = y + params["proj_b"]
    B, OH, OW, E = y.shape
    tok = y.reshape(B, OH * OW, E)
    mean = jnp.mean(tok, axis=-1, keepdims=True)
    var = jnp.mean((tok - mean) ** 2, axis=-1, keepdims=True)
    tok = (tok - mean) / jnp.sqrt(var + eps) * params["ln_gamma"] + params["ln_beta"]
    return tok, OH, OW


if __name__ == "__main__":
    key = jax.random.PRNGKey(0)
    k_x1, k_x2, k_p = jax.random.split(key, 3)

    CIN, PATCH, STRIDE, EMBED = 3, 7, 4, 128     # embed_dim=128 -> lane-dense
    params = init_params(k_p, CIN, EMBED, PATCH)

    # (shape, key): second case has P not a multiple of 8 to exercise the
    # token-tile padding path.
    cases = [((2, CIN, 32, 32), k_x1), ((2, CIN, 44, 36), k_x2)]

    for shape, kx in cases:
        x = jax.random.normal(kx, shape, jnp.float32)            # NCHW like PyTorch
        tokens, oh, ow = patch_embed_forward(x, params,
                                             patch_size=PATCH, stride=STRIDE)
        tokens = jax.block_until_ready(tokens)

        ref_tokens, roh, row = _reference(x, params,
                                          patch_size=PATCH, stride=STRIDE)
        ref_tokens = jax.block_until_ready(ref_tokens)

        assert (oh, ow) == (roh, row), ((oh, ow), (roh, row))
        assert tokens.shape == (shape[0], oh * ow, EMBED), tokens.shape
        max_err = float(jnp.max(jnp.abs(tokens - ref_tokens)))
        assert jnp.allclose(tokens, ref_tokens, atol=5e-4, rtol=5e-4), max_err

    print("KERNEL_OK")
</pallas_src>

<mosaic_0001>
module attributes {stable_mosaic.version = 11 : i64} {
  func.func @_patch_embed_kernel(%arg0: i32, %arg1: i32, %arg2: memref<1x64x192xf32, #tpu.memory_space<vmem>>, %arg3: memref<192x128xf32, #tpu.memory_space<vmem>>, %arg4: memref<3x128xf32, #tpu.memory_space<vmem>>, %arg5: memref<1x64x128xf32, #tpu.memory_space<vmem>>) attributes {dimension_semantics = [#tpu.dimension_semantics<parallel>, #tpu.dimension_semantics<parallel>], iteration_bounds = array<i64: 2, 1>, scalar_prefetch = 0 : i64, scratch_operands = 0 : i64, tpu.core_type = #tpu.core_type<tc>, window_params = [{transform_indices = @transform_0, window_bounds = array<i64: 1, 64, 192>}, {pipeline_mode = #tpu.pipeline_mode<synchronous>, transform_indices = @transform_1, window_bounds = array<i64: 192, 128>}, {pipeline_mode = #tpu.pipeline_mode<synchronous>, transform_indices = @transform_2, window_bounds = array<i64: 3, 128>}, {transform_indices = @transform_3, window_bounds = array<i64: 1, 64, 128>}]} {
    %c0 = arith.constant 0 : index
    %c0_0 = arith.constant 0 : index
    %c0_1 = arith.constant 0 : index
    %0 = vector.load %arg2[%c0, %c0_0, %c0_1] : memref<1x64x192xf32, #tpu.memory_space<vmem>>, vector<1x64x192xf32>
    %1 = vector.shape_cast %0 : vector<1x64x192xf32> to vector<64x192xf32>
    %c0_2 = arith.constant 0 : index
    %c0_3 = arith.constant 0 : index
    %2 = vector.load %arg3[%c0_2, %c0_3] : memref<192x128xf32, #tpu.memory_space<vmem>>, vector<192x128xf32>
    %cst = arith.constant dense<0.000000e+00> : vector<64x128xf32>
    %3 = tpu.matmul %1, %2, %cst {dimension_numbers = #tpu.dot_dimension_numbers<[1], [0], [0], [1], [0, 0, 1, 1], [], []>} : vector<64x192xf32>, vector<192x128xf32>, vector<64x128xf32> -> vector<64x128xf32>
    %c0_4 = arith.constant 0 : index
    %c0_5 = arith.constant 0 : index
    %4 = vector.load %arg4[%c0_4, %c0_5] : memref<3x128xf32, #tpu.memory_space<vmem>>, vector<1x128xf32>
    %5 = vector.broadcast %4 : vector<1x128xf32> to vector<64x128xf32>
    %6 = arith.addf %3, %5 : vector<64x128xf32>
    %cst_6 = arith.constant dense<0.000000e+00> : vector<64xf32>
    %7 = vector.multi_reduction <add>, %6, %cst_6 [1] : vector<64x128xf32> to vector<64xf32>
    %8 = vector.shape_cast %7 : vector<64xf32> to vector<64x1xf32>
    %cst_7 = arith.constant 1.280000e+02 : f32
    %9 = vector.broadcast %cst_7 : f32 to vector<64x1xf32>
    %10 = arith.divf %8, %9 : vector<64x1xf32>
    %11 = vector.broadcast %10 : vector<64x1xf32> to vector<64x128xf32>
    %12 = arith.subf %6, %11 : vector<64x128xf32>
    %13 = arith.mulf %12, %12 : vector<64x128xf32>
    %cst_8 = arith.constant dense<0.000000e+00> : vector<64xf32>
    %14 = vector.multi_reduction <add>, %13, %cst_8 [1] : vector<64x128xf32> to vector<64xf32>
    %15 = vector.shape_cast %14 : vector<64xf32> to vector<64x1xf32>
    %cst_9 = arith.constant 1.280000e+02 : f32
    %16 = vector.broadcast %cst_9 : f32 to vector<64x1xf32>
    %17 = arith.divf %15, %16 : vector<64x1xf32>
    %cst_10 = arith.constant 9.99999974E-6 : f32
    %18 = vector.broadcast %cst_10 : f32 to vector<64x1xf32>
    %19 = arith.addf %17, %18 : vector<64x1xf32>
    %20 = math.rsqrt %19 : vector<64x1xf32>
    %21 = vector.broadcast %20 : vector<64x1xf32> to vector<64x128xf32>
    %22 = arith.mulf %12, %21 : vector<64x128xf32>
    %c1 = arith.constant 1 : index
    %c0_11 = arith.constant 0 : index
    %23 = vector.load %arg4[%c1, %c0_11] : memref<3x128xf32, #tpu.memory_space<vmem>>, vector<1x128xf32>
    %24 = vector.broadcast %23 : vector<1x128xf32> to vector<64x128xf32>
    %25 = arith.mulf %22, %24 : vector<64x128xf32>
    %c2 = arith.constant 2 : index
    %c0_12 = arith.constant 0 : index
    %26 = vector.load %arg4[%c2, %c0_12] : memref<3x128xf32, #tpu.memory_space<vmem>>, vector<1x128xf32>
    %27 = vector.broadcast %26 : vector<1x128xf32> to vector<64x128xf32>
    %28 = arith.addf %25, %27 : vector<64x128xf32>
    %c0_13 = arith.constant 0 : index
    %c0_14 = arith.constant 0 : index
    %c0_15 = arith.constant 0 : index
    %29 = vector.load %arg5[%c0_13, %c0_14, %c0_15] : memref<1x64x128xf32, #tpu.memory_space<vmem>>, vector<1x64x128xf32>
    %30 = vector.shape_cast %29 : vector<1x64x128xf32> to vector<64x128xf32>
    %31 = vector.shape_cast %28 : vector<64x128xf32> to vector<1x64x128xf32>
    tpu.vector_store %arg5[%c0_13, %c0_14, %c0_15], %31 {strides = array<i32>} : memref<1x64x128xf32, #tpu.memory_space<vmem>>, vector<1x64x128xf32>,
    return
  }
  func.func @transform_0(%arg0: i32, %arg1: i32) -> (i32, i32, i32) {
    %c0_i32 = arith.constant 0 : i32
    %c0_i32_0 = arith.constant 0 : i32
    return %arg0, %arg1, %c0_i32 : i32, i32, i32
  }
  func.func @transform_1(%arg0: i32, %arg1: i32) -> (i32, i32) {
    %c0_i32 = arith.constant 0 : i32
    %c0_i32_0 = arith.constant 0 : i32
    %c0_i32_1 = arith.constant 0 : i32
    return %c0_i32, %c0_i32_0 : i32, i32
  }
  func.func @transform_2(%arg0: i32, %arg1: i32) -> (i32, i32) {
    %c0_i32 = arith.constant 0 : i32
    %c0_i32_0 = arith.constant 0 : i32
    %c0_i32_1 = arith.constant 0 : i32
    return %c0_i32, %c0_i32_0 : i32, i32
  }
  func.func @transform_3(%arg0: i32, %arg1: i32) -> (i32, i32, i32) {
    %c0_i32 = arith.constant 0 : i32
    %c0_i32_0 = arith.constant 0 : i32
    return %arg0, %arg1, %c0_i32 : i32, i32, i32
  }
}

</mosaic_0001>

<llo_original>
// kernel: _patch_embed_tokens.1
$region0: #{_patch_embed_tokens.1}
  #allocation0 [shape = 'u32[]', space=smem, size = 0x4, offset = 0x4, fixed_abs, tag = 'smem constant byte address 0x4 - core index']
  #allocation1 [shape = 'u32[144,128]{1,0:T(1,128)}', space=vmem, size = 0x12000, scoped, tag = 'internal scratch']
  %s0 = inlined_call_operand.vmem [shape: f32[2,64,192], index: 0, kind: input, shape index: {}]
  %s1 = inlined_call_operand.vmem [shape: f32[192,128], index: 1, kind: input, shape index: {}]
  %s2 = inlined_call_operand.vmem [shape: f32[3,128], index: 2, kind: input, shape index: {}]
  %s3 = inlined_call_operand.hbm [shape: f32[2,64,128], index: 3, kind: output, shape index: {}]
  %s4 = sld [smem:[#allocation0]]
  $region45: #{_patch_embed_tokens.1} parent=0
    _
  %s6 = ssub.s32 1, %s4
  %s7 = scalar_select 0, %s6, %s4
  $region1: #{_patch_embed_tokens.1} parent=0
    #allocation2 [shape = 'u8[65536]{0}', space=vmem, size = 0x10000, scoped, tag = 'output window, operand 0']
    #allocation3 [shape = 's32[2]{0}', space=sflag, size = 0x8, scoped, tag = 'scoped memory for _patch_embed_tokens.1']
    %8 = vsyncpa [#allocation3], 0
    %s9 = scalar_lea.sflag [#allocation3], 1
    %10 = vsyncpa %s9, 0
    loop: start=0, step=1, limit=4
    $region2: #{_patch_embed_tokens.1} parent=1 // loop_pre_header
      _
    $region3: #{_patch_embed_tokens.1} parent=1 // loop_header
      %s12 = sphi 0, %s16
      %p13 = scmp.ge.s32.totalorder %s12, 4
      %s19 = sphi 0, %s31
      %s20 = sphi 0, %s27
      %s21 = sphi 0, %s19
      %s22 = sphi 0, %s20
      %s23 = sphi 0, %s21
      %s24 = sphi 0, %s22
      %s36 = sphi 0, %s38
      %s39 = sphi 0, %s36
      %s40 = sphi 0, %s39
      %s56 = sphi 0, %s40
      %s60 = sphi 0, %s60
      %s62 = sphi 0, %s60
      %s63 = sphi 0, %s62
      %s77 = sphi 0, %s63
      %s81 = sphi 0, %s81
      %s83 = sphi 0, %s81
      %s84 = sphi 0, %s83
      %s98 = sphi 0, %s84
      %s106 = sphi 0, %s108
      %s109 = sphi 0, %s106
      %s110 = sphi 0, %s109
      %s126 = sphi 0, %s110
    $region4: #{_patch_embed_tokens.1} parent=1 // loop_header_branch
      %15 = sbr.rel (%p13) target = $region8
    $region5: #{_patch_embed_tokens.1} parent=1 // loop_body
      %s17 = ssub.s32 %s12, 1
      %s18 = ssub.s32 %s12, 2
      %s25 = sadd.s32 1, %s20
      %p26 = scmp.ge.s32.totalorder %s25, 1
      %s27 = scalar_select %p26, 0, %s25
      %s28 = sadd.s32 1, %s19
      %s29 = scalar_select %p26, %s28, %s19
      %p30 = scmp.ge.s32.totalorder %s29, 2
      %s31 = scalar_select %p30, 0, %s29
      %s32 = ssub.s32 %s19, %s31
      %s33 = ssub.s32 %s20, %s27
      %s34 = sor.u32 %s32, %s33
      %p35 = scmp.eq.s32.totalorder %s34, 0
      %s37 = sadd.s32 %s36, 1
      %s38 = scalar_select %p35, %s36, %s37
      %p41 = pneg %p35
      %p42 = scmp.eq.s32.totalorder %s12, 1
      %p43 = por %p41, %p42
      %p44 = scmp.ne.s32.totalorder %s36, %s39
      %p45 = scmp.eq.s32.totalorder %s12, 0
      %p46 = por %p44, %p45
      %p47 = scmp.ne.s32.totalorder %s36, %s39
      %p48 = scmp.eq.s32.totalorder %s17, 1
      %p49 = por %p47, %p48
      %p50 = scmp.ne.s32.totalorder %s39, %s40
      %p51 = scmp.eq.s32.totalorder %s17, 0
      %p52 = por %p50, %p51
      %p53 = scmp.ne.s32.totalorder %s39, %s40
      %p54 = scmp.eq.s32.totalorder %s18, 1
      %p55 = por %p53, %p54
      %p57 = scmp.ne.s32.totalorder %s40, %s56
      %p58 = scmp.eq.s32.totalorder %s18, 0
      %p59 = por %p57, %p58
      %s61 = sadd.s32 %s60, 1
      %p64 = scmp.eq.s32.totalorder %s12, 1
      %p65 = scmp.ne.s32.totalorder %s60, %s62
      %p66 = scmp.eq.s32.totalorder %s12, 0
      %p67 = por %p65, %p66
      %p68 = scmp.ne.s32.totalorder %s60, %s62
      %p69 = scmp.eq.s32.totalorder %s17, 1
      %p70 = por %p68, %p69
      %p71 = scmp.ne.s32.totalorder %s62, %s63
      %p72 = scmp.eq.s32.totalorder %s17, 0
      %p73 = por %p71, %p72
      %p74 = scmp.ne.s32.totalorder %s62, %s63
      %p75 = scmp.eq.s32.totalorder %s18, 1
      %p76 = por %p74, %p75
      %p78 = scmp.ne.s32.totalorder %s63, %s77
      %p79 = scmp.eq.s32.totalorder %s18, 0
      %p80 = por %p78, %p79
      %s82 = sadd.s32 %s81, 1
      %p85 = scmp.eq.s32.totalorder %s12, 1
      %p86 = scmp.ne.s32.totalorder %s81, %s83
      %p87 = scmp.eq.s32.totalorder %s12, 0
      %p88 = por %p86, %p87
      %p89 = scmp.ne.s32.totalorder %s81, %s83
      %p90 = scmp.eq.s32.totalorder %s17, 1
      %p91 = por %p89, %p90
      %p92 = scmp.ne.s32.totalorder %s83, %s84
      %p93 = scmp.eq.s32.totalorder %s17, 0
      %p94 = por %p92, %p93
      %p95 = scmp.ne.s32.totalorder %s83, %s84
      %p96 = scmp.eq.s32.totalorder %s18, 1
      %p97 = por %p95, %p96
      %p99 = scmp.ne.s32.totalorder %s84, %s98
      %p100 = scmp.eq.s32.totalorder %s18, 0
      %p101 = por %p99, %p100
      %s102 = ssub.s32 %s19, %s31
      %s103 = ssub.s32 %s20, %s27
      %s104 = sor.u32 %s102, %s103
      %p105 = scmp.eq.s32.totalorder %s104, 0
      %s107 = sadd.s32 %s106, 1
      %s108 = scalar_select %p105, %s106, %s107
      %p111 = pneg %p105
      %p112 = scmp.eq.s32.totalorder %s12, 1
      %p113 = por %p111, %p112
      %p114 = scmp.ne.s32.totalorder %s106, %s109
      %p115 = scmp.eq.s32.totalorder %s12, 0
      %p116 = por %p114, %p115
      %p117 = scmp.ne.s32.totalorder %s106, %s109
      %p118 = scmp.eq.s32.totalorder %s17, 1
      %p119 = por %p117, %p118
      %p120 = scmp.ne.s32.totalorder %s109, %s110
      %p121 = scmp.eq.s32.totalorder %s17, 0
      %p122 = por %p120, %p121
      %p123 = scmp.ne.s32.totalorder %s109, %s110
      %p124 = scmp.eq.s32.totalorder %s18, 1
      %p125 = por %p123, %p124
      %p127 = scmp.ne.s32.totalorder %s110, %s126
      %p128 = scmp.eq.s32.totalorder %s18, 0
      %p129 = por %p127, %p128
      %p130 = scmp.le.s32.totalorder 1, %s12
      %p131 = scmp.lt.s32.totalorder %s12, 3
      %p132 = pnand %p130, %p131
      %p133 = pneg %p132
      // Predicated region
      $region9: #{_patch_embed_tokens.1} parent=5 // pred_check
        _
      $region10: #{_patch_embed_tokens.1} parent=5 // pred_check_branch
        %135 = sbr.rel (%p132) target = $region12
      $region11: #{_patch_embed_tokens.1} parent=5 // pred_region
        %s136 = ssub.s32 %s12, 1
        // Predicated region
        $region13: #{_patch_embed_tokens.1} parent=11 // pred_check
          %p137 = pneg %p73
        $region14: #{_patch_embed_tokens.1} parent=11 // pred_check_branch
          %139 = sbr.rel (%p137) target = $region16
        $region15: #{_patch_embed_tokens.1} parent=11 // pred_region
          _
        $region16: #{_patch_embed_tokens.1} parent=11 // pred_fallthru
          _
        // Predicated region
        $region17: #{_patch_embed_tokens.1} parent=11 // pred_check
          %p140 = pneg %p94
        $region18: #{_patch_embed_tokens.1} parent=11 // pred_check_branch
          %142 = sbr.rel (%p140) target = $region20
        $region19: #{_patch_embed_tokens.1} parent=11 // pred_region
          _
        $region20: #{_patch_embed_tokens.1} parent=11 // pred_fallthru
          _
      $region12: #{_patch_embed_tokens.1} parent=5 // pred_fallthru
        _
      %p143 = scmp.lt.s32.totalorder %s12, 2
      // Predicated region
      $region21: #{_patch_embed_tokens.1} parent=5 // pred_check
        %p144 = pneg %p143
      $region22: #{_patch_embed_tokens.1} parent=5 // pred_check_branch
        %146 = sbr.rel (%p144) target = $region24
      $region23: #{_patch_embed_tokens.1} parent=5 // pred_region
        // Predicated region
        $region25: #{_patch_embed_tokens.1} parent=23 // pred_check
          %p147 = pneg %p46
        $region26: #{_patch_embed_tokens.1} parent=23 // pred_check_branch
          %149 = sbr.rel (%p147) target = $region28
        $region27: #{_patch_embed_tokens.1} parent=23 // pred_region
          %s150 = smul.u32 8, %s20
          %p151 = scmp.lt.s32.totalorder %s19, 1
          %s152 = scalar_select %p151, %s19, 1
          %p153 = scmp.lt.s32.totalorder %s150, 7
          %s154 = scalar_select %p153, %s150, 7
          %s155 = smul.addr %s154, 2
          %s156 = smul.addr %s152, 16
          %s157 = sadd.s32 %s155, %s156
          %s158 = smul.addr %s157, 8
          %s159 = scalar_lea.vmem %s0, %s158
          %s160 = smul.u32 8, %s20
        $region28: #{_patch_embed_tokens.1} parent=23 // pred_fallthru
          _
      $region24: #{_patch_embed_tokens.1} parent=5 // pred_fallthru
        _
      %p161 = scmp.le.s32.totalorder 1, %s12
      %p162 = scmp.lt.s32.totalorder %s12, 3
      %p163 = pnand %p161, %p162
      %p164 = pneg %p163
      // Predicated region
      $region29: #{_patch_embed_tokens.1} parent=5 // pred_check
        _
      $region30: #{_patch_embed_tokens.1} parent=5 // pred_check_branch
        %166 = sbr.rel (%p163) target = $region32
      $region31: #{_patch_embed_tokens.1} parent=5 // pred_region
        %s167 = ssub.s32 %s12, 1
        %s168 = smul.u32 8, %s22
        %p169 = scmp.lt.s32.totalorder %s21, 1
        %s170 = scalar_select %p169, %s21, 1
        %p171 = scmp.lt.s32.totalorder %s168, 7
        %s172 = scalar_select %p171, %s168, 7
        %s173 = smul.addr %s172, 2
        %s174 = smul.addr %s170, 16
        %s175 = sadd.s32 %s173, %s174
        %s176 = smul.addr %s175, 8
        %s177 = scalar_lea.vmem %s0, %s176
        %p178 = pneg %p52
        %p179 = pneg %p49
        %p180 = pneg %p73
        %p181 = pneg %p70
        %p182 = pneg %p94
        %p183 = pneg %p91
        %p184 = pneg %p122
        %p185 = pneg %p119
        %s186 = sand.u32 %s109, 1
        %s187 = scalar_lea.sflag [#allocation3], %s186
        %s188 = sand.u32 %s109, 1
        %s189 = smul.addr %s188, 64
        %s190 = scalar_lea.vmem [#allocation2], %s189
        %s191 = smul.u32 8, %s22
        %p192 = scmp.lt.s32.totalorder %s21, 1
        %s193 = scalar_select %p192, %s21, 1
        %p194 = scmp.lt.s32.totalorder %s191, 7
        %s195 = scalar_select %p194, %s191, 7
        %s196 = smul.addr %s195, 2
        %s197 = smul.addr %s193, 16
        %s198 = sadd.s32 %s196, %s197
        %s199 = smul.addr %s198, 8
        %s200 = scalar_lea.vmem %s0, %s199
        %s201 = smul.u32 8, %s22
        %s202 = smul.u32 8, %s22
        %v203 = vld [vmem:[%s200] sm:$0xff]
        %v204 = vld [vmem:[%s200 + $0x8] sm:$0xff]
        %v205 = vld [vmem:[%s200 + $0x10] sm:$0xff]
        %v206 = vld [vmem:[%s200 + $0x18] sm:$0xff]
        %v207 = vld [vmem:[%s200 + $0x20] sm:$0xff]
        %v208 = vld [vmem:[%s200 + $0x28] sm:$0xff]
        %v209 = vld [vmem:[%s200 + $0x30] sm:$0xff]
        %v210 = vld [vmem:[%s200 + $0x38] sm:$0xff]
        %v211 = vld [vmem:[%s200 + $0x40] sm:$0xff]
        %v212 = vld [vmem:[%s200 + $0x48] sm:$0xff]
        %v213 = vld [vmem:[%s200 + $0x50] sm:$0xff]
        %v214 = vld [vmem:[%s200 + $0x58] sm:$0xff]
        %v215 = vld [vmem:[%s200 + $0x60] sm:$0xff]
        %v216 = vld [vmem:[%s200 + $0x68] sm:$0xff]
        %v217 = vld [vmem:[%s200 + $0x70] sm:$0xff]
        %v218 = vld [vmem:[%s200 + $0x78] sm:$0xff]
        %v219 = vld [vmem:[%s1] sm:$0xff]
        %v220 = vld [vmem:[%s1 + $0x8] sm:$0xff]
        %v221 = vld [vmem:[%s1 + $0x10] sm:$0xff]
        %v222 = vld [vmem:[%s1 + $0x18] sm:$0xff]
        %v223 = vld [vmem:[%s1 + $0x20] sm:$0xff]
        %v224 = vld [vmem:[%s1 + $0x28] sm:$0xff]
        %v225 = vld [vmem:[%s1 + $0x30] sm:$0xff]
        %v226 = vld [vmem:[%s1 + $0x38] sm:$0xff]
        %v227 = vld [vmem:[%s1 + $0x40] sm:$0xff]
        %v228 = vld [vmem:[%s1 + $0x48] sm:$0xff]
        %v229 = vld [vmem:[%s1 + $0x50] sm:$0xff]
        %v230 = vld [vmem:[%s1 + $0x58] sm:$0xff]
        %v231 = vld [vmem:[%s1 + $0x60] sm:$0xff]
        %v232 = vld [vmem:[%s1 + $0x68] sm:$0xff]
        %v233 = vld [vmem:[%s1 + $0x70] sm:$0xff]
        %v234 = vld [vmem:[%s1 + $0x78] sm:$0xff]
        %v235 = vld [vmem:[%s1 + $0x80] sm:$0xff]
        %v236 = vld [vmem:[%s1 + $0x88] sm:$0xff]
        %v237 = vld [vmem:[%s1 + $0x90] sm:$0xff]
        %v238 = vld [vmem:[%s1 + $0x98] sm:$0xff]
        %v239 = vld [vmem:[%s1 + $0xa0] sm:$0xff]
        %v240 = vld [vmem:[%s1 + $0xa8] sm:$0xff]
        %v241 = vld [vmem:[%s1 + $0xb0] sm:$0xff]
        %v242 = vld [vmem:[%s1 + $0xb8] sm:$0xff]
        %v243 = vld [vmem:[%s2] sm:$0x1]
        %v244 = vlaneseq
        %v245 = vshrl.u32 %v244, 7
        %v246 = vsub.s32 0, %v245
        %v247 = vrot.slane %v243, %v246
        %vm248 = vcmask 523264
        %v250 = vsel %vm248, %v204, 0
        %v253 = vsel %vm248, %v206, 0
        %v256 = vsel %vm248, %v208, 0
        %v259 = vsel %vm248, %v210, 0
        %v262 = vsel %vm248, %v212, 0
        %v265 = vsel %vm248, %v214, 0
        %v268 = vsel %vm248, %v216, 0
        %v271 = vsel %vm248, %v218, 0
        %273 = vmatprep.subr.mxu0 0.0
        %274 = vmatpush1.msra.mxu0 %v234
        %275 = vmatprep.subr.mxu0 0.0
        %276 = vmatpush1.msra.mxu0 %v233
        %277 = vmatprep.subr.mxu0 0.0
        %278 = vmatpush1.msra.mxu0 %v232
        %279 = vmatprep.subr.mxu0 0.0
        %280 = vmatpush1.msra.mxu0 %v231
        %281 = vmatprep.subr.mxu0 0.0
        %282 = vmatpush1.msra.mxu0 %v230
        %283 = vmatprep.subr.mxu0 0.0
        %284 = vmatpush1.msra.mxu0 %v229
        %285 = vmatprep.subr.mxu0 0.0
        %286 = vmatpush1.msra.mxu0 %v228
        %287 = vmatprep.subr.mxu0 0.0
        %288 = vmatpush1.msra.mxu0 %v227
        %289 = vmatprep.subr.mxu0 0.0
        %290 = vmatpush1.msra.mxu0 %v226
        %291 = vmatprep.subr.mxu0 0.0
        %292 = vmatpush1.msra.mxu0 %v225
        %293 = vmatprep.subr.mxu0 0.0
        %294 = vmatpush1.msra.mxu0 %v224
        %295 = vmatprep.subr.mxu0 0.0
        %296 = vmatpush1.msra.mxu0 %v223
        %297 = vmatprep.subr.mxu0 0.0
        %298 = vmatpush1.msra.mxu0 %v222
        %299 = vmatprep.subr.mxu0 0.0
        %300 = vmatpush1.msra.mxu0 %v221
        %301 = vmatprep.subr.mxu0 0.0
        %302 = vmatpush1.msra.mxu0 %v220
        %303 = vmatprep.subr.mxu0 0.0
        %304 = vmatpush1.msra.mxu0 %v219
        %305 = vmatprep.subr.mxu0 0.0
        %306 = vmatpush2.msra.mxu0 0.0
        %307 = vmatprep.subr.mxu0 0.0
        %308 = vmatpush2.msra.mxu0 0.0
        %309 = vmatprep.subr.mxu0 0.0
        %310 = vmatpush2.msra.mxu0 0.0
        %311 = vmatprep.subr.mxu0 0.0
        %312 = vmatpush2.msra.mxu0 0.0
        %313 = vmatprep.subr.mxu0 0.0
        %314 = vmatpush2.msra.mxu0 0.0
        %315 = vmatprep.subr.mxu0 0.0
        %316 = vmatpush2.msra.mxu0 0.0
        %317 = vmatprep.subr.mxu0 0.0
        %318 = vmatpush2.msra.mxu0 0.0
        %319 = vmatprep.subr.mxu0 0.0
        %320 = vmatpush2.msra.mxu0 0.0
        %321 = vmatprep.subr.mxu0 0.0
        %322 = vmatpush2.msra.mxu0 %v242
        %323 = vmatprep.subr.mxu0 0.0
        %324 = vmatpush2.msra.mxu0 %v241
        %325 = vmatprep.subr.mxu0 0.0
        %326 = vmatpush2.msra.mxu0 %v240
        %327 = vmatprep.subr.mxu0 0.0
        %328 = vmatpush2.msra.mxu0 %v239
        %329 = vmatprep.subr.mxu0 0.0
        %330 = vmatpush2.msra.mxu0 %v238
        %331 = vmatprep.subr.mxu0 0.0
        %332 = vmatpush2.msra.mxu0 %v237
        %333 = vmatprep.subr.mxu0 0.0
        %334 = vmatpush2.msra.mxu0 %v236
        %335 = vmatprep.subr.mxu0 0.0
        %336 = vmatpush2.msra.mxu0 %v235
        %337 = vmatprep.mubr.f32.mxu0 %v250
        %338 = vmatmul.mubr.f32.gmra.mxu0 %v203
        %v339 = vpop.f32.mrf.mxu0
        %v340 = vadd.f32 %v247, %v339
        %v341 = vpop.f32.mrf.mxu0
        %342 = vmatprep.mubr.f32.mxu0 %v253
        %343 = vmatmul.mubr.f32.gmra.mxu0 %v205
        %v344 = vpop.f32.mrf.mxu0
        %v345 = vadd.f32 %v247, %v344
        %v346 = vpop.f32.mrf.mxu0
        %347 = vmatprep.mubr.f32.mxu0 %v256
        %348 = vmatmul.mubr.f32.gmra.mxu0 %v207
        %v349 = vpop.f32.mrf.mxu0
        %v350 = vadd.f32 %v247, %v349
        %v351 = vpop.f32.mrf.mxu0
        %352 = vmatprep.mubr.f32.mxu0 %v259
        %353 = vmatmul.mubr.f32.gmra.mxu0 %v209
        %v354 = vpop.f32.mrf.mxu0
        %v355 = vadd.f32 %v247, %v354
        %v356 = vpop.f32.mrf.mxu0
        %357 = vmatprep.mubr.f32.mxu0 %v262
        %358 = vmatmul.mubr.f32.gmra.mxu0 %v211
        %v359 = vpop.f32.mrf.mxu0
        %v360 = vadd.f32 %v247, %v359
        %v361 = vpop.f32.mrf.mxu0
        %362 = vmatprep.mubr.f32.mxu0 %v265
        %363 = vmatmul.mubr.f32.gmra.mxu0 %v213
        %v364 = vpop.f32.mrf.mxu0
        %v365 = vadd.f32 %v247, %v364
        %v366 = vpop.f32.mrf.mxu0
        %367 = vmatprep.mubr.f32.mxu0 %v268
        %368 = vmatmul.mubr.f32.gmra.mxu0 %v215
        %v369 = vpop.f32.mrf.mxu0
        %v370 = vadd.f32 %v247, %v369
        %v371 = vpop.f32.mrf.mxu0
        %372 = vmatprep.mubr.f32.mxu0 %v271
        %373 = vmatmul.mubr.f32.gmra.mxu0 %v217
        %v374 = vpop.f32.mrf.mxu0
        %v375 = vadd.f32 %v247, %v374
        %v376 = vpop.f32.mrf.mxu0
        %377 = vdwg.mxu0
        %378 = vadd.xlane.f32.xlu0 %v340
        %v379 = vpop.xlane.xlu0 %378
        %380 = vadd.xlane.f32.xlu0 %v345
        %v381 = vpop.xlane.xlu0 %380
        %382 = vadd.xlane.f32.xlu0 %v350
        %v383 = vpop.xlane.xlu0 %382
        %384 = vadd.xlane.f32.xlu0 %v355
        %v385 = vpop.xlane.xlu0 %384
        %386 = vadd.xlane.f32.xlu0 %v360
        %v387 = vpop.xlane.xlu0 %386
        %388 = vadd.xlane.f32.xlu0 %v365
        %v389 = vpop.xlane.xlu0 %388
        %390 = vadd.xlane.f32.xlu0 %v370
        %v391 = vpop.xlane.xlu0 %390
        %392 = vadd.xlane.f32.xlu0 %v375
        %v393 = vpop.xlane.xlu0 %392
        %v394 = vrcp.pop 128.0
        %v395 = vmul.f32 %v379, %v394
        %v396 = vmul.f32 %v381, %v394
        %v397 = vmul.f32 %v383, %v394
        %v398 = vmul.f32 %v385, %v394
        %v399 = vmul.f32 %v387, %v394
        %v400 = vmul.f32 %v389, %v394
        %v401 = vmul.f32 %v391, %v394
        %v402 = vmul.f32 %v393, %v394
        %v403 = vsub.f32 %v340, %v395
        %v404 = vsub.f32 %v345, %v396
        %v405 = vsub.f32 %v350, %v397
        %v406 = vsub.f32 %v355, %v398
        %v407 = vsub.f32 %v360, %v399
        %v408 = vsub.f32 %v365, %v400
        %v409 = vsub.f32 %v370, %v401
        %v410 = vsub.f32 %v375, %v402
        %v411 = vmul.f32 %v403, %v403
        %v412 = vmul.f32 %v404, %v404
        %v413 = vmul.f32 %v405, %v405
        %v414 = vmul.f32 %v406, %v406
        %v415 = vmul.f32 %v407, %v407
        %v416 = vmul.f32 %v408, %v408
        %v417 = vmul.f32 %v409, %v409
        %v418 = vmul.f32 %v410, %v410
        %419 = vadd.xlane.f32.xlu0 %v411
        %v420 = vpop.xlane.xlu0 %419
        %421 = vadd.xlane.f32.xlu0 %v412
        %v422 = vpop.xlane.xlu0 %421
        %423 = vadd.xlane.f32.xlu0 %v413
        %v424 = vpop.xlane.xlu0 %423
        %425 = vadd.xlane.f32.xlu0 %v414
        %v426 = vpop.xlane.xlu0 %425
        %427 = vadd.xlane.f32.xlu0 %v415
        %v428 = vpop.xlane.xlu0 %427
        %429 = vadd.xlane.f32.xlu0 %v416
        %v430 = vpop.xlane.xlu0 %429
        %431 = vadd.xlane.f32.xlu0 %v417
        %v432 = vpop.xlane.xlu0 %431
        %433 = vadd.xlane.f32.xlu0 %v418
        %v434 = vpop.xlane.xlu0 %433
        %v435 = vmul.f32 %v420, %v394
        %v436 = vmul.f32 %v422, %v394
        %v437 = vmul.f32 %v424, %v394
        %v438 = vmul.f32 %v426, %v394
        %v439 = vmul.f32 %v428, %v394
        %v440 = vmul.f32 %v430, %v394
        %v441 = vmul.f32 %v432, %v394
        %v442 = vmul.f32 %v434, %v394
        %v443 = vadd.f32 %v435, 1e-05
        %v444 = vadd.f32 %v436, 1e-05
        %v445 = vadd.f32 %v437, 1e-05
        %v446 = vadd.f32 %v438, 1e-05
        %v447 = vadd.f32 %v439, 1e-05
        %v448 = vadd.f32 %v440, 1e-05
        %v449 = vadd.f32 %v441, 1e-05
        %v450 = vadd.f32 %v442, 1e-05
        %v451 = vrsqrt.pop %v443
        %v452 = vrsqrt.pop %v444
        %v453 = vrsqrt.pop %v445
        %v454 = vrsqrt.pop %v446
        %v455 = vrsqrt.pop %v447
        %v456 = vrsqrt.pop %v448
        %v457 = vrsqrt.pop %v449
        %v458 = vrsqrt.pop %v450
        %v459 = vmul.f32 %v403, %v451
        %v460 = vmul.f32 %v404, %v452
        %v461 = vmul.f32 %v405, %v453
        %v462 = vmul.f32 %v406, %v454
        %v463 = vmul.f32 %v407, %v455
        %v464 = vmul.f32 %v408, %v456
        %v465 = vmul.f32 %v409, %v457
        %v466 = vmul.f32 %v410, %v458
        %v467 = vld [vmem:[%s2 + $0x1] sm:$0x1]
        %v468 = vlaneseq
        %v469 = vshrl.u32 %v468, 7
        %v470 = vsub.s32 0, %v469
        %v471 = vrot.slane %v467, %v470
        %v472 = vmul.f32 %v459, %v471
        %v473 = vmul.f32 %v460, %v471
        %v474 = vmul.f32 %v461, %v471
        %v475 = vmul.f32 %v462, %v471
        %v476 = vmul.f32 %v463, %v471
        %v477 = vmul.f32 %v464, %v471
        %v478 = vmul.f32 %v465, %v471
        %v479 = vmul.f32 %v466, %v471
        %v480 = vld [vmem:[%s2 + $0x2] sm:$0x1]
        %v481 = vlaneseq
        %v482 = vshrl.u32 %v481, 7
        %v483 = vsub.s32 0, %v482
        %v484 = vrot.slane %v480, %v483
        %v485 = vadd.f32 %v472, %v484
        %v486 = vadd.f32 %v473, %v484
        %v487 = vadd.f32 %v474, %v484
        %v488 = vadd.f32 %v475, %v484
        %v489 = vadd.f32 %v476, %v484
        %v490 = vadd.f32 %v477, %v484
        %v491 = vadd.f32 %v478, %v484
        %v492 = vadd.f32 %v479, %v484
        %493 = vst [vmem:[%s190] sm:$0xff] %v485
        %494 = vst [vmem:[%s190 + $0x8] sm:$0xff] %v486
        %495 = vst [vmem:[%s190 + $0x10] sm:$0xff] %v487
        %496 = vst [vmem:[%s190 + $0x18] sm:$0xff] %v488
        %497 = vst [vmem:[%s190 + $0x20] sm:$0xff] %v489
        %498 = vst [vmem:[%s190 + $0x28] sm:$0xff] %v490
        %499 = vst [vmem:[%s190 + $0x30] sm:$0xff] %v491
        %500 = vst [vmem:[%s190 + $0x38] sm:$0xff] %v492
        %s501 = sand.u32 %s109, 1
        %s502 = scalar_lea.sflag [#allocation3], %s501
        %s503 = sand.u32 %s109, 1
        %s504 = smul.addr %s503, 64
        %s505 = scalar_lea.vmem [#allocation2], %s504
        // Predicated region
        $region33: #{_patch_embed_tokens.1} parent=31 // pred_check
          %p506 = pneg %p119
        $region34: #{_patch_embed_tokens.1} parent=31 // pred_check_branch
          %508 = sbr.rel (%p506) target = $region36
        $region35: #{_patch_embed_tokens.1} parent=31 // pred_region
          %s509 = smul.u32 8, %s22
          %s511 = ssub.s32 1024, 1024
          %512 = vsyncadd %s502, %s511
          %s513 = smul.addr %s21, 8
          %s514 = sadd.s32 %s509, %s513
          %s515 = smul.addr %s514, 128
          %s516 = scalar_lea.hbm %s3, %s515
          %s517 = sshll.u32 %s505, 4
          %s518 = int_to_ptr.vmem [resolvable:$true] %s517
          %523 = dma.vmem_to_hbm [thread:$0]  %s518, 1024, %s516, %s502, 128, 128, 8
        $region36: #{_patch_embed_tokens.1} parent=31 // pred_fallthru
          _
      $region32: #{_patch_embed_tokens.1} parent=5 // pred_fallthru
        _
      %p524 = scmp.le.s32.totalorder 2, %s12
      // Predicated region
      $region37: #{_patch_embed_tokens.1} parent=5 // pred_check
        %p525 = pneg %p524
      $region38: #{_patch_embed_tokens.1} parent=5 // pred_check_branch
        %527 = sbr.rel (%p525) target = $region40
      $region39: #{_patch_embed_tokens.1} parent=5 // pred_region
        %s528 = ssub.s32 %s12, 2
        // Predicated region
        $region41: #{_patch_embed_tokens.1} parent=39 // pred_check
          %p529 = pneg %p125
        $region42: #{_patch_embed_tokens.1} parent=39 // pred_check_branch
          %531 = sbr.rel (%p529) target = $region44
        $region43: #{_patch_embed_tokens.1} parent=39 // pred_region
          %s532 = sand.u32 %s110, 1
          %s533 = scalar_lea.sflag [#allocation3], %s532
          %s534 = sand.u32 %s110, 1
          %s535 = smul.addr %s534, 64
          %s536 = scalar_lea.vmem [#allocation2], %s535
          %537 = dma.done %s533, 1024
        $region44: #{_patch_embed_tokens.1} parent=39 // pred_fallthru
          _
      $region40: #{_patch_embed_tokens.1} parent=5 // pred_fallthru
        _
    $region6: #{_patch_embed_tokens.1} parent=1 // loop_footer
      %s16 = sadd.s32 1, %s12
    $region7: #{_patch_embed_tokens.1} parent=1 // loop_footer_branch
      %11 = sbr.rel target = $region3
    $region8: #{_patch_embed_tokens.1} parent=1 // loop_exit
      _
    %538 = vsyncpa [#allocation3], 1
    %s539 = scalar_lea.sflag [#allocation3], 1
    %540 = vsyncpa %s539, 1

</llo_original>
